<compile_context>
chip_gen: v7x
topology: tpu7x:2x2x1
jax: 0.10.0
libtpu: 0.0.40
codegen_flags: <defaults>
</compile_context>

<pallas_src>
import functools

import jax
import jax.numpy as jnp
from jax.experimental import pallas as pl
from jax.experimental.pallas import tpu as pltpu


def _copy_kernel(x_ref, o_ref):
    # Identity copy of the current block.
    o_ref[...] = x_ref[...]


def _round_up(x: int, m: int) -> int:
    return ((x + m - 1) // m) * m


@functools.lru_cache(maxsize=1)
def _chip_tuning():
    """Returns (target_block_bytes, vmem_limit_bytes), generation-aware."""
    target_block = 4 * 1024 * 1024     # v5e/v6e: 4 MiB blocks hit ~85% of HBM roofline
    vmem_limit = 32 * 1024 * 1024      # 2x(in)+2x(out) 4 MiB blocks + slack, legal everywhere
    try:
        info = pltpu.get_tpu_info()
        vmem_cap = getattr(info, "vmem_capacity_bytes", None)
        if vmem_cap is not None and vmem_cap <= 64 * 1024 * 1024:
            # v7x: 64 MiB VMEM, ~3.2 TB/s HBM -> ~0.35us/step is ~13% at 4 MiB.
            # 8 MiB blocks halve that tax; 4 x 8 MiB double-buffered = 32 MiB
            # still leaves half of v7x VMEM free.
            target_block = 8 * 1024 * 1024
            vmem_limit = 40 * 1024 * 1024
    except Exception:
        pass  # fall back to conservative defaults (safe on all generations)
    return target_block, vmem_limit


def _stream_copy(x2d, block_shape, grid, index_map, *, alias, vmem_limit_bytes):
    """Near-roofline identity copy of a 2D slab via auto-pipelined BlockSpecs."""
    itemsize = jnp.dtype(x2d.dtype).itemsize
    nbytes = x2d.shape[0] * x2d.shape[1] * itemsize
    return pl.pallas_call(
        _copy_kernel,
        out_shape=jax.ShapeDtypeStruct(x2d.shape, x2d.dtype),
        grid=grid,
        in_specs=[pl.BlockSpec(block_shape, index_map)],
        out_specs=pl.BlockSpec(block_shape, index_map),
        input_output_aliases=({0: 0} if alias else {}),
        compiler_params=pltpu.CompilerParams(
            # NOTE(v7x): "parallel" is expected to shard this axis across both
            # TensorCores; if a trace shows otherwise, switch to
            # pltpu.CORE_PARALLEL (kept as-is for guaranteed lowering on
            # single-TC v5e/v6e).
            dimension_semantics=("parallel",),
            vmem_limit_bytes=vmem_limit_bytes,
        ),
        cost_estimate=pl.CostEstimate(
            flops=0, transcendentals=0, bytes_accessed=2 * nbytes),
    )(x2d)


@functools.partial(jax.jit, static_argnames=("d_out", "donate"))
def view_module_forward(x: jax.Array, d_out: tuple, donate: bool = False) -> jax.Array:
    """Equivalent of ViewModule(d_out).forward(x): x.reshape((x.shape[0], *d_out)).

    Set donate=True only if the caller actually donates x; otherwise XLA will
    insert a protective copy and the alias buys nothing.
    """
    b = x.shape[0]
    flat = 1
    for s in x.shape[1:]:
        flat *= s
    d_out = tuple(d_out)
    d_out_flat = 1
    for s in d_out:
        d_out_flat *= s
    assert d_out_flat == flat, "d_out incompatible with input shape"
    out_shape_final = (b,) + d_out

    itemsize = jnp.dtype(x.dtype).itemsize
    row_align = 8 * max(1, 4 // itemsize)   # f32: 8 sublanes, bf16: 16, int8/fp8: 32
    total = b * flat
    target_block_bytes, vmem_limit_bytes = _chip_tuning()

    # Lane-dense 2D slab: pick the widest cols (multiple of 128) that divides
    # the element count. Only divisibility by cols is required (review #1); a
    # trailing partial row-block is masked by Pallas.
    cols = None
    for cand in (1024, 512, 256, 128):
        if total % cand == 0:
            cols = cand
            break

    if cols is not None:
        # --- Fast path: lane- and sublane-dense slab, single HBM pass. ---
        rows = total // cols
        x2d = x.reshape(rows, cols)                       # metadata-only
        max_tile_rows = max(
            row_align,
            (target_block_bytes // (cols * itemsize)) // row_align * row_align,
        )
        if rows <= max_tile_rows:
            tile_rows = rows                              # full extent: always legal
            # Split so both v7x TensorCores get work, but only when each half
            # is >= ~1 MiB (review #4); harmless on single-TC v5e/v6e, skipped
            # for small tensors where the extra grid step is pure overhead.
            if rows >= 2 * row_align and rows * cols * itemsize >= 2 * 1024 * 1024:
                tile_rows = _round_up(pl.cdiv(rows, 2), row_align)
        else:
            tile_rows = max_tile_rows                     # multiple of row_align
        grid = (pl.cdiv(rows, tile_rows),)                # tail block masked by Pallas
        y2d = _stream_copy(
            x2d, (tile_rows, cols), grid, lambda i: (i, 0),
            alias=donate, vmem_limit_bytes=vmem_limit_bytes)
    else:
        # --- Ragged path (total % 128 != 0): single-pass (1, total) copy. ---
        # No whole-array jnp.pad / slice-back (review #2): HBM traffic stays at
        # 1x read + 1x write; only the Pallas-masked tail block is partial.
        # Sublane occupancy is 1/sublane_tile, acceptable for these rare shapes.
        x2d = x.reshape(1, total)                         # metadata-only
        tile_cols = 65536                                 # ~2 MiB padded VMEM per buffer
        if total < tile_cols:
            tile_cols = total if total < 128 else (total // 128) * 128
        grid = (pl.cdiv(total, tile_cols),)
        y2d = _stream_copy(
            x2d, (1, tile_cols), grid, lambda i: (0, i),
            alias=donate, vmem_limit_bytes=vmem_limit_bytes)

    return y2d.reshape(out_shape_final)                   # metadata-only


if __name__ == "__main__":
    key = jax.random.PRNGKey(0)

    # Small CIFAR/MNIST-like input: B=2, C=4, H=W=16 (NCHW).
    x = jax.random.normal(key, (2, 4, 16, 16), dtype=jnp.float32)

    # ViewModule(d_out=[4 * 16 * 16]) — flatten to (B, 1024). Aligned fast path
    # (total=2048 is a multiple of 128 but NOT of 128*8 -> exercises relaxed check).
    d_out = (4 * 16 * 16,)
    y = jax.block_until_ready(view_module_forward(x, d_out))
    expected = x.reshape((x.shape[0],) + d_out)
    assert y.shape == (2, 1024), y.shape
    assert y.dtype == x.dtype
    assert bool(jnp.array_equal(y, expected))

    # Non-flat d_out, e.g. (16, 64). Same aligned path.
    d_out2 = (16, 64)
    y2 = jax.block_until_ready(view_module_forward(x, d_out2))
    assert y2.shape == (2, 16, 64)
    assert bool(jnp.array_equal(y2, x.reshape(2, 16, 64)))

    # Awkward size exercising the ragged single-pass path (total = 486 elems).
    x3 = jax.random.normal(jax.random.PRNGKey(0), (2, 3, 9, 9), dtype=jnp.float32)
    y3 = jax.block_until_ready(view_module_forward(x3, (3 * 9 * 9,)))
    assert y3.shape == (2, 243)
    assert bool(jnp.array_equal(y3, x3.reshape(2, 243)))

    # Tiny ragged tensor (total = 30 < 128): full-extent single block.
    x4 = jax.random.normal(jax.random.PRNGKey(0), (2, 3, 5), dtype=jnp.float32)
    y4 = jax.block_until_ready(view_module_forward(x4, (15,)))
    assert y4.shape == (2, 15)
    assert bool(jnp.array_equal(y4, x4.reshape(2, 15)))

    # bf16 (sublane tile 16) on the aligned path.
    x5 = jax.random.normal(jax.random.PRNGKey(0), (2, 8, 8, 8), dtype=jnp.bfloat16)
    y5 = jax.block_until_ready(view_module_forward(x5, (8, 64)))
    assert y5.shape == (2, 8, 64) and y5.dtype == jnp.bfloat16
    assert bool(jnp.array_equal(y5, x5.reshape(2, 8, 64)))

    print("KERNEL_OK")
</pallas_src>

<mosaic_0001>
module attributes {stable_mosaic.version = 11 : i64} {
  func.func @_copy_kernel(%arg0: i32, %arg1: memref<2x1024xf32, #tpu.memory_space<vmem>>, %arg2: memref<2x1024xf32, #tpu.memory_space<vmem>>) attributes {dimension_semantics = [#tpu.dimension_semantics<parallel>], iteration_bounds = array<i64: 1>, scalar_prefetch = 0 : i64, scratch_operands = 0 : i64, tpu.core_type = #tpu.core_type<tc>, window_params = [{transform_indices = @transform_0, window_bounds = array<i64: 2, 1024>}, {transform_indices = @transform_1, window_bounds = array<i64: 2, 1024>}]} {
    %c0 = arith.constant 0 : index
    %c0_0 = arith.constant 0 : index
    %0 = vector.load %arg1[%c0, %c0_0] : memref<2x1024xf32, #tpu.memory_space<vmem>>, vector<2x1024xf32>
    %c0_1 = arith.constant 0 : index
    %c0_2 = arith.constant 0 : index
    %1 = vector.load %arg2[%c0_1, %c0_2] : memref<2x1024xf32, #tpu.memory_space<vmem>>, vector<2x1024xf32>
    tpu.vector_store %arg2[%c0_1, %c0_2], %0 {strides = array<i32>} : memref<2x1024xf32, #tpu.memory_space<vmem>>, vector<2x1024xf32>,
    return
  }
  func.func @transform_0(%arg0: i32) -> (i32, i32) {
    %c0_i32 = arith.constant 0 : i32
    %c0_i32_0 = arith.constant 0 : i32
    return %arg0, %c0_i32 : i32, i32
  }
  func.func @transform_1(%arg0: i32) -> (i32, i32) {
    %c0_i32 = arith.constant 0 : i32
    %c0_i32_0 = arith.constant 0 : i32
    return %arg0, %c0_i32 : i32, i32
  }
}

</mosaic_0001>

<llo_original>
// kernel: view_module_forward.1
$region0: #{view_module_forward.1}
  #allocation0 [shape = 'u32[]', space=smem, size = 0x4, offset = 0x4, fixed_abs, tag = 'smem constant byte address 0x4 - core index']
  #allocation1 [shape = 'u32[144,128]{1,0:T(1,128)}', space=vmem, size = 0x12000, scoped, tag = 'internal scratch']
  %s0 = inlined_call_operand.vmem [shape: f32[2,1024], index: 0, kind: input, shape index: {}]
  %s1 = inlined_call_operand.hbm [shape: f32[2,1024], index: 1, kind: output, shape index: {}]
  %s2 = sld [smem:[#allocation0]]
  $region14: #{view_module_forward.1} parent=0
    _
  %s4 = ssub.s32 1, %s2
  %s5 = scalar_select 0, %s4, %s2
  $region1: #{view_module_forward.1} parent=0
    #allocation2 [shape = 'u8[8192]{0}', space=vmem, size = 0x2000, scoped, tag = 'output window, operand 0, single buffered']
    #allocation3 [shape = 's32[1]{0}', space=sflag, size = 0x4, scoped, tag = 'scoped memory for view_module_forward.1']
    %6 = vsyncpa [#allocation3], 0
    // Predicated region
    $region2: #{view_module_forward.1} parent=1 // pred_check
      _
    $region3: #{view_module_forward.1} parent=1 // pred_check_branch
      %8 = sbr.rel (0) target = $region5
    $region4: #{view_module_forward.1} parent=1 // pred_region
      _
    $region5: #{view_module_forward.1} parent=1 // pred_fallthru
      _
    %v9 = vld [vmem:[%s0] sm:$0xff]
    %v10 = vld [vmem:[%s0 + $0x8] sm:$0xff]
    %11 = vst [vmem:[#allocation2] sm:$0xff] %v9
    %12 = vst [vmem:[#allocation2 + $0x8] sm:$0xff] %v10
    // Predicated region
    $region6: #{view_module_forward.1} parent=1 // pred_check
      _
    $region7: #{view_module_forward.1} parent=1 // pred_check_branch
      %14 = sbr.rel (0) target = $region9
    $region8: #{view_module_forward.1} parent=1 // pred_region
      %s16 = ssub.s32 256, 256
      %17 = vsyncadd [#allocation3], %s16
      %s19 = sshll.u32 [#allocation2], 4
      %s20 = int_to_ptr.vmem [resolvable:$true] %s19
      %22 = dma.vmem_to_hbm [thread:$0]  %s20, 256, %s1, [#allocation3]
    $region9: #{view_module_forward.1} parent=1 // pred_fallthru
      _
    // Predicated region
    $region10: #{view_module_forward.1} parent=1 // pred_check
      _
    $region11: #{view_module_forward.1} parent=1 // pred_check_branch
      %24 = sbr.rel (0) target = $region13
    $region12: #{view_module_forward.1} parent=1 // pred_region
      %25 = dma.done [#allocation3], 256
    $region13: #{view_module_forward.1} parent=1 // pred_fallthru
      _
    %26 = vsyncpa [#allocation3], 1

</llo_original>
